<compile_context>
chip_gen: v6e
topology: v6e:2x2x1
jax: 0.10.0
libtpu: 0.0.40
codegen_flags: <defaults>
</compile_context>

<pallas_src>
import functools

import jax
import jax.numpy as jnp
from jax.experimental import pallas as pl
from jax.experimental.pallas import tpu as pltpu


def _lmhead_kernel(x_ref, w_ref, b_ref, o_ref, acc_ref):
    # x_ref:  (TM, TK)   -- flattened (batch*seq) rows, K slice of E
    # w_ref:  (TK, TN)   -- W^T tile
    # b_ref:  (1,  TN)   -- bias tile
    # o_ref:  (TM, TN)   -- output tile
    # acc_ref:(TM, TN) f32 accumulator (resident across the K axis)
    k = pl.program_id(2)

    @pl.when(k == 0)
    def _():
        acc_ref[...] = jnp.zeros_like(acc_ref)

    acc_ref[...] += jnp.dot(
        x_ref[...], w_ref[...], preferred_element_type=jnp.float32
    )

    @pl.when(k == pl.num_programs(2) - 1)
    def _():
        o_ref[...] = (acc_ref[...] + b_ref[...].astype(jnp.float32)).astype(
            o_ref.dtype
        )


@functools.partial(
    jax.jit, static_argnames=("tm", "tn", "tk", "out_dtype")
)
def lm_head(x, w_t, bias, *, tm=512, tn=1024, tk=2048, out_dtype=None):
    """x: (B, S, E), w_t: (E, V), bias: (V,) -> (B, S, V)."""
    B, S, E = x.shape
    V = w_t.shape[1]
    M = B * S
    out_dtype = x.dtype if out_dtype is None else out_dtype

    # Clamp tile sizes to the problem; a clamped tile equals the full dim so the
    # (8, 128) block-shape constraint is always satisfied (defaults are already
    # multiples of 256 / 128 when they do tile).
    tm = M if M <= tm else tm
    tn = V if V <= tn else tn
    tk = E if E <= tk else tk

    x2d = x.reshape(M, E)
    b2d = bias.reshape(1, V)

    grid = (pl.cdiv(M, tm), pl.cdiv(V, tn), pl.cdiv(E, tk))

    # VMEM budget: double-buffered input/output tiles + f32 accumulator + slack.
    x_it = jnp.dtype(x.dtype).itemsize
    w_it = jnp.dtype(w_t.dtype).itemsize
    o_it = jnp.dtype(out_dtype).itemsize
    tile_bytes = 2 * (tm * tk * x_it + tk * tn * w_it + tn * w_it + tm * tn * o_it)
    tile_bytes += tm * tn * 4  # accumulator (single-buffered scratch)
    vmem_limit = int(min(max(tile_bytes + (4 << 20), 32 << 20), 100 << 20))

    cost = pl.CostEstimate(
        flops=2 * M * E * V,
        transcendentals=0,
        bytes_accessed=(
            M * E * x_it + E * V * w_it + V * w_it + M * V * o_it
        ),
    )

    out2d = pl.pallas_call(
        _lmhead_kernel,
        out_shape=jax.ShapeDtypeStruct((M, V), out_dtype),
        grid_spec=pltpu.PrefetchScalarGridSpec(
            num_scalar_prefetch=0,
            grid=grid,
            in_specs=[
                pl.BlockSpec((tm, tk), lambda i, j, k: (i, k)),  # activations
                pl.BlockSpec((tk, tn), lambda i, j, k: (k, j)),  # W^T tile
                pl.BlockSpec((1, tn), lambda i, j, k: (0, j)),   # bias tile
            ],
            out_specs=pl.BlockSpec((tm, tn), lambda i, j, k: (i, j)),
            scratch_shapes=[pltpu.VMEM((tm, tn), jnp.float32)],
        ),
        compiler_params=pltpu.CompilerParams(
            dimension_semantics=("parallel", "parallel", "arbitrary"),
            vmem_limit_bytes=vmem_limit,
        ),
        cost_estimate=cost,
    )(x2d, w_t, b2d)

    return out2d.reshape(B, S, V)


if __name__ == "__main__":
    # Small shapes consistent with the module's forward:
    # (batch_size, sequence_length, embedding_dimension) -> (batch, seq, vocab)
    batch, seq, emb, vocab = 2, 8, 32, 256

    key = jax.random.PRNGKey(0)
    kx, kw, kb = jax.random.split(key, 3)

    # Deterministic parameter init mimicking torch.nn.Linear(emb, vocab):
    # weight shape (vocab, emb), bias shape (vocab,), uniform(-1/sqrt(emb), 1/sqrt(emb)).
    bound = 1.0 / (emb ** 0.5)
    weight = jax.random.uniform(kw, (vocab, emb), jnp.float32, -bound, bound)
    bias = jax.random.uniform(kb, (vocab,), jnp.float32, -bound, bound)

    x = jax.random.normal(kx, (batch, seq, emb), jnp.float32)

    # Kernel expects W^T layout (emb, vocab).
    w_t = weight.T

    out = lm_head(x, w_t, bias)
    out = jax.block_until_ready(out)

    # Reference check (plain JAX) — same math as torch.nn.Linear.
    ref = jnp.einsum("bse,ve->bsv", x, weight) + bias
    assert out.shape == (batch, seq, vocab), out.shape
    assert jnp.allclose(out, ref, atol=1e-4, rtol=1e-4), float(
        jnp.max(jnp.abs(out - ref))
    )

    print("KERNEL_OK")
</pallas_src>

<mosaic_0001>
module attributes {stable_mosaic.version = 11 : i64} {
  func.func @_lmhead_kernel(%arg0: i32, %arg1: i32, %arg2: i32, %arg3: memref<16x32xf32, #tpu.memory_space<vmem>>, %arg4: memref<32x256xf32, #tpu.memory_space<vmem>>, %arg5: memref<1x256xf32, #tpu.memory_space<vmem>>, %arg6: memref<16x256xf32, #tpu.memory_space<vmem>>, %arg7: memref<16x256xf32, #tpu.memory_space<vmem>>) attributes {dimension_semantics = [#tpu.dimension_semantics<parallel>, #tpu.dimension_semantics<parallel>, #tpu.dimension_semantics<arbitrary>], iteration_bounds = array<i64: 1, 1, 1>, scalar_prefetch = 0 : i64, scratch_operands = 1 : i64, tpu.core_type = #tpu.core_type<tc>, window_params = [{transform_indices = @transform_0, window_bounds = array<i64: 16, 32>}, {transform_indices = @transform_1, window_bounds = array<i64: 32, 256>}, {transform_indices = @transform_2, window_bounds = array<i64: 1, 256>}, {transform_indices = @transform_3, window_bounds = array<i64: 16, 256>}]} {
    %c0_i32 = arith.constant 0 : i32
    %0 = arith.cmpi eq, %arg2, %c0_i32 : i32
    %1 = arith.extui %0 : i1 to i32
    %c0_i32_0 = arith.constant 0 : i32
    %2 = arith.cmpi ne, %1, %c0_i32_0 : i32
    scf.if %2 {
      %cst_10 = arith.constant 0.000000e+00 : f32
      %12 = vector.broadcast %cst_10 : f32 to vector<16x256xf32>
      %c0_11 = arith.constant 0 : index
      %c0_12 = arith.constant 0 : index
      %13 = vector.load %arg7[%c0_11, %c0_12] : memref<16x256xf32, #tpu.memory_space<vmem>>, vector<16x256xf32>
      tpu.vector_store %arg7[%c0_11, %c0_12], %12 {strides = array<i32>} : memref<16x256xf32, #tpu.memory_space<vmem>>, vector<16x256xf32>,
    } else {
    }
    %c0 = arith.constant 0 : index
    %c0_1 = arith.constant 0 : index
    %3 = vector.load %arg7[%c0, %c0_1] : memref<16x256xf32, #tpu.memory_space<vmem>>, vector<16x256xf32>
    %c0_2 = arith.constant 0 : index
    %c0_3 = arith.constant 0 : index
    %4 = vector.load %arg3[%c0_2, %c0_3] : memref<16x32xf32, #tpu.memory_space<vmem>>, vector<16x32xf32>
    %c0_4 = arith.constant 0 : index
    %c0_5 = arith.constant 0 : index
    %5 = vector.load %arg4[%c0_4, %c0_5] : memref<32x256xf32, #tpu.memory_space<vmem>>, vector<32x256xf32>
    %cst = arith.constant dense<0.000000e+00> : vector<16x256xf32>
    %6 = tpu.matmul %4, %5, %cst {dimension_numbers = #tpu.dot_dimension_numbers<[1], [0], [0], [1], [0, 0, 1, 1], [], []>} : vector<16x32xf32>, vector<32x256xf32>, vector<16x256xf32> -> vector<16x256xf32>
    %7 = arith.addf %3, %6 : vector<16x256xf32>
    %c0_6 = arith.constant 0 : index
    %c0_7 = arith.constant 0 : index
    %8 = vector.load %arg7[%c0_6, %c0_7] : memref<16x256xf32, #tpu.memory_space<vmem>>, vector<16x256xf32>
    tpu.vector_store %arg7[%c0_6, %c0_7], %7 {strides = array<i32>} : memref<16x256xf32, #tpu.memory_space<vmem>>, vector<16x256xf32>,
    %c0_i32_8 = arith.constant 0 : i32
    %9 = arith.cmpi eq, %arg2, %c0_i32_8 : i32
    %10 = arith.extui %9 : i1 to i32
    %c0_i32_9 = arith.constant 0 : i32
    %11 = arith.cmpi ne, %10, %c0_i32_9 : i32
    scf.if %11 {
      %c0_10 = arith.constant 0 : index
      %c0_11 = arith.constant 0 : index
      %12 = vector.load %arg7[%c0_10, %c0_11] : memref<16x256xf32, #tpu.memory_space<vmem>>, vector<16x256xf32>
      %c0_12 = arith.constant 0 : index
      %c0_13 = arith.constant 0 : index
      %13 = vector.load %arg5[%c0_12, %c0_13] : memref<1x256xf32, #tpu.memory_space<vmem>>, vector<1x256xf32>
      %14 = vector.broadcast %13 : vector<1x256xf32> to vector<16x256xf32>
      %15 = arith.addf %12, %14 : vector<16x256xf32>
      %c0_14 = arith.constant 0 : index
      %c0_15 = arith.constant 0 : index
      %16 = vector.load %arg6[%c0_14, %c0_15] : memref<16x256xf32, #tpu.memory_space<vmem>>, vector<16x256xf32>
      tpu.vector_store %arg6[%c0_14, %c0_15], %15 {strides = array<i32>} : memref<16x256xf32, #tpu.memory_space<vmem>>, vector<16x256xf32>,
    } else {
    }
    return
  }
  func.func @transform_0(%arg0: i32, %arg1: i32, %arg2: i32) -> (i32, i32) {
    %c0_i32 = arith.constant 0 : i32
    return %arg0, %arg2 : i32, i32
  }
  func.func @transform_1(%arg0: i32, %arg1: i32, %arg2: i32) -> (i32, i32) {
    %c0_i32 = arith.constant 0 : i32
    return %arg2, %arg1 : i32, i32
  }
  func.func @transform_2(%arg0: i32, %arg1: i32, %arg2: i32) -> (i32, i32) {
    %c0_i32 = arith.constant 0 : i32
    %c0_i32_0 = arith.constant 0 : i32
    return %c0_i32, %arg1 : i32, i32
  }
  func.func @transform_3(%arg0: i32, %arg1: i32, %arg2: i32) -> (i32, i32) {
    %c0_i32 = arith.constant 0 : i32
    return %arg0, %arg1 : i32, i32
  }
}

</mosaic_0001>

<llo_original>
// kernel: lm_head.1
$region0: #{lm_head.1}
  #allocation0 [shape = 'u32[]', space=smem, size = 0x4, offset = 0x4, fixed_abs, tag = 'smem constant byte address 0x4 - core index']
  #allocation1 [shape = 'u32[144,128]{1,0:T(1,128)}', space=vmem, size = 0x12000, scoped, tag = 'internal scratch']
  #allocation2 [shape = 'f32[16,256]{1,0:T(8,128)}', space=vmem, size = 0x4000, scoped, tag = 'scratch operand']
  %s0 = inlined_call_operand.hbm [shape: f32[16,32], index: 0, kind: input, shape index: {}]
  %s1 = inlined_call_operand.hbm [shape: f32[32,256], index: 1, kind: input, shape index: {}]
  %s2 = inlined_call_operand.vmem [shape: f32[1,256], index: 2, kind: input, shape index: {}]
  %s3 = inlined_call_operand.hbm [shape: f32[16,256], index: 3, kind: output, shape index: {}]
  %s4 = sld [smem:[#allocation0]]
  $region38: #{lm_head.1} parent=0
    _
  %s6 = ssub.s32 1, %s4
  %s7 = scalar_select 0, %s6, %s4
  $region1: #{lm_head.1} parent=0
    #allocation3 [shape = 'u8[8192]{0}', space=vmem, size = 0x2000, scoped, tag = 'input window, operand 0, single buffered']
    #allocation4 [shape = 's32[1]{0}', space=sflag, size = 0x4, scoped, tag = 'scoped memory for lm_head.1']
    #allocation5 [shape = 's32[1]{0}', space=sflag, size = 0x4, scoped, tag = 'scoped memory for lm_head.1']
    #allocation6 [shape = 'u8[32768]{0}', space=vmem, size = 0x8000, scoped, tag = 'input window, operand 1, single buffered']
    #allocation7 [shape = 's32[1]{0}', space=sflag, size = 0x4, scoped, tag = 'scoped memory for lm_head.1']
    #allocation8 [shape = 'u8[16384]{0}', space=vmem, size = 0x4000, scoped, tag = 'output window, operand 0, single buffered']
    %8 = vsyncpa [#allocation4], 0
    %9 = vsyncpa [#allocation7], 0
    %10 = vsyncpa [#allocation5], 0
    // Predicated region
    $region2: #{lm_head.1} parent=1 // pred_check
      _
    $region3: #{lm_head.1} parent=1 // pred_check_branch
      %12 = sbr.rel (0) target = $region5
    $region4: #{lm_head.1} parent=1 // pred_region
      %s14 = ssub.s32 256, 256
      %15 = vsyncadd [#allocation4], %s14
      %s16 = sshll.u32 [#allocation3], 4
      %s17 = int_to_ptr.vmem [resolvable:$true] %s16
      %22 = dma.hbm_to_vmem [thread:$0]  %s0, 256, %s17, [#allocation4], 128, 128, 8
    $region5: #{lm_head.1} parent=1 // pred_fallthru
      _
    // Predicated region
    $region6: #{lm_head.1} parent=1 // pred_check
      _
    $region7: #{lm_head.1} parent=1 // pred_check_branch
      %24 = sbr.rel (0) target = $region9
    $region8: #{lm_head.1} parent=1 // pred_region
      %s26 = ssub.s32 1024, 1024
      %27 = vsyncadd [#allocation7], %s26
      %s28 = sshll.u32 [#allocation6], 4
      %s29 = int_to_ptr.vmem [resolvable:$true] %s28
      %34 = dma.hbm_to_vmem [thread:$0]  %s1, 1024, %s29, [#allocation7], 256, 256, 16
    $region9: #{lm_head.1} parent=1 // pred_fallthru
      _
    // Predicated region
    $region10: #{lm_head.1} parent=1 // pred_check
      _
    $region11: #{lm_head.1} parent=1 // pred_check_branch
      %36 = sbr.rel (0) target = $region13
    $region12: #{lm_head.1} parent=1 // pred_region
      _
    $region13: #{lm_head.1} parent=1 // pred_fallthru
      _
    // Predicated region
    $region14: #{lm_head.1} parent=1 // pred_check
      _
    $region15: #{lm_head.1} parent=1 // pred_check_branch
      %38 = sbr.rel (0) target = $region17
    $region16: #{lm_head.1} parent=1 // pred_region
      %39 = dma.done [#allocation4], 256
    $region17: #{lm_head.1} parent=1 // pred_fallthru
      _
    // Predicated region
    $region18: #{lm_head.1} parent=1 // pred_check
      _
    $region19: #{lm_head.1} parent=1 // pred_check_branch
      %41 = sbr.rel (0) target = $region21
    $region20: #{lm_head.1} parent=1 // pred_region
      %42 = dma.done [#allocation7], 1024
    $region21: #{lm_head.1} parent=1 // pred_fallthru
      _
    %p43 = scmp.eq.s32.totalorder 0, 0
    // Predicated region
    $region22: #{lm_head.1} parent=1 // pred_check
      %p44 = pneg %p43
    $region23: #{lm_head.1} parent=1 // pred_check_branch
      %46 = sbr.rel (%p44) target = $region25
    $region24: #{lm_head.1} parent=1 // pred_region
      %47 = vst [vmem:[#allocation2] sm:$0xff] 0.0
      %48 = vst [vmem:[#allocation2 + $0x8] sm:$0xff] 0.0
      %49 = vst [vmem:[#allocation2 + $0x10] sm:$0xff] 0.0
      %50 = vst [vmem:[#allocation2 + $0x18] sm:$0xff] 0.0
    $region25: #{lm_head.1} parent=1 // pred_fallthru
      _
    %v51 = vld [vmem:[#allocation2] sm:$0xff]
    %v52 = vld [vmem:[#allocation2 + $0x8] sm:$0xff]
    %v53 = vld [vmem:[#allocation2 + $0x10] sm:$0xff]
    %v54 = vld [vmem:[#allocation2 + $0x18] sm:$0xff]
    %v55 = vld [vmem:[#allocation3] sm:$0xff]
    %v56 = vld [vmem:[#allocation3 + $0x8] sm:$0xff]
    %v57 = vld [vmem:[#allocation6] sm:$0xff]
    %v58 = vld [vmem:[#allocation6 + $0x8] sm:$0xff]
    %v59 = vld [vmem:[#allocation6 + $0x10] sm:$0xff]
    %v60 = vld [vmem:[#allocation6 + $0x18] sm:$0xff]
    %v61 = vld [vmem:[#allocation6 + $0x20] sm:$0xff]
    %v62 = vld [vmem:[#allocation6 + $0x28] sm:$0xff]
    %v63 = vld [vmem:[#allocation6 + $0x30] sm:$0xff]
    %v64 = vld [vmem:[#allocation6 + $0x38] sm:$0xff]
    %vm65 = vcmask 261120
    %v67 = vsel %vm65, %v55, 0
    %v70 = vsel %vm65, %v56, 0
    %72 = vmatprep.subr.mxu0 0.0
    %73 = vmatpush1.msra.mxu0 0.0
    %74 = vmatprep.subr.mxu0 0.0
    %75 = vmatpush1.msra.mxu0 0.0
    %76 = vmatprep.subr.mxu0 0.0
    %77 = vmatpush1.msra.mxu0 0.0
    %78 = vmatprep.subr.mxu0 0.0
    %79 = vmatpush1.msra.mxu0 0.0
    %80 = vmatprep.subr.mxu0 0.0
    %81 = vmatpush1.msra.mxu0 0.0
    %82 = vmatprep.subr.mxu0 0.0
    %83 = vmatpush1.msra.mxu0 0.0
    %84 = vmatprep.subr.mxu0 0.0
    %85 = vmatpush1.msra.mxu0 0.0
    %86 = vmatprep.subr.mxu0 0.0
    %87 = vmatpush1.msra.mxu0 0.0
    %88 = vmatprep.subr.mxu0 0.0
    %89 = vmatpush1.msra.mxu0 0.0
    %90 = vmatprep.subr.mxu0 0.0
    %91 = vmatpush1.msra.mxu0 0.0
    %92 = vmatprep.subr.mxu0 0.0
    %93 = vmatpush1.msra.mxu0 0.0
    %94 = vmatprep.subr.mxu0 0.0
    %95 = vmatpush1.msra.mxu0 0.0
    %96 = vmatprep.subr.mxu0 %v64
    %97 = vmatpush1.msra.mxu0 %v63
    %98 = vmatprep.subr.mxu0 %v62
    %99 = vmatpush1.msra.mxu0 %v61
    %100 = vmatprep.subr.mxu0 %v60
    %101 = vmatpush1.msra.mxu0 %v59
    %102 = vmatprep.subr.mxu0 %v58
    %103 = vmatpush1.msra.mxu0 %v57
    %104 = vmatprep.subr.mxu0 0.0
    %105 = vmatpush2.msra.mxu0 0.0
    %106 = vmatprep.subr.mxu0 0.0
    %107 = vmatpush2.msra.mxu0 0.0
    %108 = vmatprep.subr.mxu0 0.0
    %109 = vmatpush2.msra.mxu0 0.0
    %110 = vmatprep.subr.mxu0 0.0
    %111 = vmatpush2.msra.mxu0 0.0
    %112 = vmatprep.subr.mxu0 0.0
    %113 = vmatpush2.msra.mxu0 0.0
    %114 = vmatprep.subr.mxu0 0.0
    %115 = vmatpush2.msra.mxu0 0.0
    %116 = vmatprep.subr.mxu0 0.0
    %117 = vmatpush2.msra.mxu0 0.0
    %118 = vmatprep.subr.mxu0 0.0
    %119 = vmatpush2.msra.mxu0 0.0
    %120 = vmatprep.subr.mxu0 0.0
    %121 = vmatpush2.msra.mxu0 0.0
    %122 = vmatprep.subr.mxu0 0.0
    %123 = vmatpush2.msra.mxu0 0.0
    %124 = vmatprep.subr.mxu0 0.0
    %125 = vmatpush2.msra.mxu0 0.0
    %126 = vmatprep.subr.mxu0 0.0
    %127 = vmatpush2.msra.mxu0 0.0
    %128 = vmatprep.subr.mxu0 0.0
    %129 = vmatpush2.msra.mxu0 0.0
    %130 = vmatprep.subr.mxu0 0.0
    %131 = vmatpush2.msra.mxu0 0.0
    %132 = vmatprep.subr.mxu0 0.0
    %133 = vmatpush2.msra.mxu0 0.0
    %134 = vmatprep.subr.mxu0 0.0
    %135 = vmatpush2.msra.mxu0 0.0
    %136 = vmatprep.mubr.f32.mxu0 0.0
    %137 = vmatmul.mubr.f32.gmra.mxu0 %v67
    %v138 = vpop.f32.mrf.mxu0
    %v139 = vadd.f32 0.0, %v138
    %v140 = vpop.f32.mrf.mxu0
    %v141 = vadd.f32 0.0, %v140
    %142 = vmatprep.mubr.f32.mxu0 0.0
    %143 = vmatmul.mubr.f32.gmra.mxu0 %v70
    %v144 = vpop.f32.mrf.mxu0
    %v145 = vadd.f32 0.0, %v144
    %v146 = vpop.f32.mrf.mxu0
    %v147 = vadd.f32 0.0, %v146
    %148 = vdwg.mxu0
    %v149 = vadd.f32 %v51, %v139
    %v150 = vadd.f32 %v52, %v141
    %v151 = vadd.f32 %v53, %v145
    %v152 = vadd.f32 %v54, %v147
    %153 = vst [vmem:[#allocation2] sm:$0xff] %v149
    %154 = vst [vmem:[#allocation2 + $0x8] sm:$0xff] %v150
    %155 = vst [vmem:[#allocation2 + $0x10] sm:$0xff] %v151
    %156 = vst [vmem:[#allocation2 + $0x18] sm:$0xff] %v152
    // Predicated region
    $region26: #{lm_head.1} parent=1 // pred_check
      %p157 = pneg %p43
    $region27: #{lm_head.1} parent=1 // pred_check_branch
      %159 = sbr.rel (%p157) target = $region29
    $region28: #{lm_head.1} parent=1 // pred_region
      %v160 = vld [vmem:[#allocation2] sm:$0xff]
      %v161 = vld [vmem:[#allocation2 + $0x8] sm:$0xff]
      %v162 = vld [vmem:[#allocation2 + $0x10] sm:$0xff]
      %v163 = vld [vmem:[#allocation2 + $0x18] sm:$0xff]
      %v164 = vld [vmem:[%s2] sm:$0x3]
      %v166 = vlaneseq
      %v167 = vshrl.u32 %v166, 7
      %v168 = vsub.s32 0, %v167
      %v169 = vrot.slane %v164, %v168
      %v170 = vlaneseq
      %v171 = vshrl.u32 %v170, 7
      %v172 = vsub.s32 1, %v171
      %v173 = vrot.slane %v164, %v172
      %v176 = vadd.f32 %v160, %v169
      %v177 = vadd.f32 %v161, %v173
      %v178 = vadd.f32 %v162, %v169
      %v179 = vadd.f32 %v163, %v173
      %180 = vst [vmem:[#allocation8] sm:$0xff] %v176
      %181 = vst [vmem:[#allocation8 + $0x8] sm:$0xff] %v177
      %182 = vst [vmem:[#allocation8 + $0x10] sm:$0xff] %v178
      %183 = vst [vmem:[#allocation8 + $0x18] sm:$0xff] %v179
    $region29: #{lm_head.1} parent=1 // pred_fallthru
      _
    // Predicated region
    $region30: #{lm_head.1} parent=1 // pred_check
      _
    $region31: #{lm_head.1} parent=1 // pred_check_branch
      %185 = sbr.rel (0) target = $region33
    $region32: #{lm_head.1} parent=1 // pred_region
      %s187 = ssub.s32 512, 512
      %188 = vsyncadd [#allocation5], %s187
      %s189 = sshll.u32 [#allocation8], 4
      %s190 = int_to_ptr.vmem [resolvable:$true] %s189
      %195 = dma.vmem_to_hbm [thread:$0]  %s190, 512, %s3, [#allocation5], 256, 256, 16
    $region33: #{lm_head.1} parent=1 // pred_fallthru
      _
    // Predicated region
    $region34: #{lm_head.1} parent=1 // pred_check
      _
    $region35: #{lm_head.1} parent=1 // pred_check_branch
      %197 = sbr.rel (0) target = $region37
    $region36: #{lm_head.1} parent=1 // pred_region
      %198 = dma.done [#allocation5], 512
    $region37: #{lm_head.1} parent=1 // pred_fallthru
      _
    %199 = vsyncpa [#allocation4], 1
    %200 = vsyncpa [#allocation7], 1
    %201 = vsyncpa [#allocation5], 1

</llo_original>
